<compile_context>
chip_gen: v6e
topology: v6e:2x2x1
jax: 0.10.0
libtpu: 0.0.40
codegen_flags: <defaults>
</compile_context>

<pallas_src>
import jax
import jax.numpy as jnp
from jax.experimental import pallas as pl
from jax.experimental.pallas import tpu as pltpu

# ---- synthetic config (mirrors config.* used by the PyTorch module) ----
BATCH_SIZE = 2      # config.batch_size
D = 32              # config.connector_dim
PARA_LIMIT = 16     # config.para_limit   (context length Lc)
QUES_LIMIT = 8      # config.ques_limit   (question length Lq)
DROPOUT_P = 0.1     # config.dropout      (identity in eval mode)


def _cq_attention_kernel(c_ref, q_ref, w_ref, o_ref):
    """Whole batch in one invocation (no grid), channel-first throughout.

    c_ref: (B, D, Lc)   context  (module's native layout)
    q_ref: (B, D, Lq)   question (module's native layout)
    w_ref: (B, 3D, 1)   trilinear weight, D on the sublane axis
    o_ref: (B, 4D, Lc)  = cat([C, A, C*A, C*B], dim=1) (module's native layout)
    """
    C = c_ref[...]                       # (B, D, Lc)
    Q = q_ref[...]                       # (B, D, Lq)
    W = w_ref[...]                       # (B, 3D, 1)
    d = C.shape[1]

    wq = W[:, 0:d, :]                    # (B, D, 1)
    wc = W[:, d:2 * d, :]                # (B, D, 1)
    wm = W[:, 2 * d:3 * d, :]            # (B, D, 1)
    # TODO(synk): on v5e, if inputs arrive as bf16, upcast C/Q/W to f32 here
    # (no native bf16 VALU); on v6e/v7x the native-dtype path below is right.

    # S[b, i, j] = wq.Q[:, j] + wc.C[:, i] + (wm * C[:, i]).Q[:, j]
    # Rank-1 terms: VPU multiply + sublane reduce (XLU) -- keep them off the MXU.
    q_row = jnp.sum(Q * wq, axis=1).astype(jnp.float32)[:, None, :]   # (B, 1, Lq)
    c_col = jnp.sum(C * wc, axis=1).astype(jnp.float32)[:, :, None]   # (B, Lc, 1)

    # Bilinear term: the only real score matmul.  Transpose (C*wm) in VMEM
    # (XLU, free slot) so the contraction is in standard matmul orientation.
    Cw_t = jnp.swapaxes(C * wm, 1, 2)                                 # (B, Lc, D)
    m_term = jnp.einsum('bid,bdj->bij', Cw_t, Q,
                        preferred_element_type=jnp.float32)           # (B, Lc, Lq)

    S = m_term + c_col + q_row                                        # (B, Lc, Lq)

    # Row softmax (torch dim=2) and column softmax (torch dim=1), each with
    # its own max so neither can under/overflow even with large/masked scores.
    e1 = jnp.exp(S - jnp.max(S, axis=2, keepdims=True))
    S1 = e1 / jnp.sum(e1, axis=2, keepdims=True)                      # (B, Lc, Lq)
    e2 = jnp.exp(S - jnp.max(S, axis=1, keepdims=True))
    S2 = e2 / jnp.sum(e2, axis=1, keepdims=True)                      # (B, Lc, Lq)

    # A = Q @ S1^T                                    (B, D, Lc)
    # B = C @ (S1 @ S2^T)^T == (C @ S2) @ S1^T        (reassociated; no Lc x Lc
    # intermediate, and A / U are independent MXU ops that can overlap).
    A = jnp.einsum('bdj,bij->bdi', Q, S1, preferred_element_type=jnp.float32)
    U = jnp.einsum('bdk,bkj->bdj', C, S2, preferred_element_type=jnp.float32)
    Bm = jnp.einsum('bdj,bij->bdi', U, S1, preferred_element_type=jnp.float32)

    od = o_ref.dtype
    Cc = C.astype(od)
    A = A.astype(od)
    Bm = Bm.astype(od)
    # Build the full output slab in registers and issue a single store.
    o_ref[...] = jnp.concatenate([Cc, A, Cc * A, Cc * Bm], axis=1)
    # TODO(synk): F.dropout is identity in eval mode; training-mode dropout
    # would use pltpu.prng_seed / pltpu.prng_random_bits + mask/scale here.


@jax.jit
def cq_attention(C, Q, W):
    """C: (B, D, Lc), Q: (B, D, Lq), W: (B, 1, 3D) -> (B, 4D, Lc)."""
    Bsz, d, Lc = C.shape
    # (B, 1, 3D) -> (B, 3D, 1): identical linear order (metadata-only bitcast);
    # puts D on the sublane axis so in-kernel weight broadcasts need no relayout.
    Wr = W.reshape(Bsz, 3 * d, 1)
    out = pl.pallas_call(
        _cq_attention_kernel,
        out_shape=jax.ShapeDtypeStruct((Bsz, 4 * d, Lc), C.dtype),
        in_specs=[
            pl.BlockSpec(memory_space=pltpu.MemorySpace.VMEM),
            pl.BlockSpec(memory_space=pltpu.MemorySpace.VMEM),
            pl.BlockSpec(memory_space=pltpu.MemorySpace.VMEM),
        ],
        out_specs=pl.BlockSpec(memory_space=pltpu.MemorySpace.VMEM),
    )(C, Q, Wr)
    # TODO(synk): on v7x, switch to grid=(B,) with per-batch BlockSpecs and
    # dimension_semantics=("parallel",) to use the second TensorCore, and tile
    # over Lc + set vmem_limit_bytes at real QANet sizes (64 MiB VMEM on v7x).
    return out


def cq_attention_ref(C, Q, W):
    """Pure-JAX reference mirroring the PyTorch forward (eval mode)."""
    B, d, _ = C.shape
    Wb = W.reshape(B, 3 * d)
    wq, wc, wm = Wb[:, :d], Wb[:, d:2 * d], Wb[:, 2 * d:]
    S = (jnp.einsum('bd,bdj->bj', wq, Q)[:, None, :]
         + jnp.einsum('bd,bdi->bi', wc, C)[:, :, None]
         + jnp.einsum('bdi,bd,bdj->bij', C, wm, Q))
    S1 = jax.nn.softmax(S, axis=2)
    S2 = jax.nn.softmax(S, axis=1)
    A = jnp.einsum('bdq,biq->bdi', Q, S1)               # Q @ S1^T
    M = jnp.einsum('biq,bjq->bij', S1, S2)              # S1 @ S2^T
    Batt = jnp.einsum('bdi,bki->bdk', C, M)             # C @ M^T
    return jnp.concatenate([C, A, C * A, C * Batt], axis=1)


if __name__ == "__main__":
    key = jax.random.PRNGKey(0)
    kw, kc, kq = jax.random.split(key, 3)

    # xavier_normal_ on a (B, 1, 3D) tensor: fan_in = 1*3D, fan_out = B*3D
    fan_in, fan_out = 1 * 3 * D, BATCH_SIZE * 3 * D
    std = (2.0 / (fan_in + fan_out)) ** 0.5
    W = jax.random.normal(kw, (BATCH_SIZE, 1, 3 * D), jnp.float32) * std

    C = jax.random.normal(kc, (BATCH_SIZE, D, PARA_LIMIT), jnp.float32)
    Q = jax.random.normal(kq, (BATCH_SIZE, D, QUES_LIMIT), jnp.float32)

    out = cq_attention(C, Q, W)
    out = jax.block_until_ready(out)

    ref = cq_attention_ref(C, Q, W)
    assert out.shape == (BATCH_SIZE, 4 * D, PARA_LIMIT)
    assert jnp.allclose(out, ref, atol=1e-4, rtol=1e-4)

    print("KERNEL_OK")
</pallas_src>

<mosaic_0001>
module attributes {stable_mosaic.version = 11 : i64} {
  func.func @_cq_attention_kernel(%arg0: memref<2x32x16xf32, #tpu.memory_space<vmem>>, %arg1: memref<2x32x8xf32, #tpu.memory_space<vmem>>, %arg2: memref<2x96x1xf32, #tpu.memory_space<vmem>>, %arg3: memref<2x128x16xf32, #tpu.memory_space<vmem>>) attributes {dimension_semantics = [], scalar_prefetch = 0 : i64, scratch_operands = 0 : i64, tpu.core_type = #tpu.core_type<tc>} {
    %c0 = arith.constant 0 : index
    %c0_0 = arith.constant 0 : index
    %c0_1 = arith.constant 0 : index
    %0 = vector.load %arg0[%c0, %c0_0, %c0_1] : memref<2x32x16xf32, #tpu.memory_space<vmem>>, vector<2x32x16xf32>
    %c0_2 = arith.constant 0 : index
    %c0_3 = arith.constant 0 : index
    %c0_4 = arith.constant 0 : index
    %1 = vector.load %arg1[%c0_2, %c0_3, %c0_4] : memref<2x32x8xf32, #tpu.memory_space<vmem>>, vector<2x32x8xf32>
    %c0_5 = arith.constant 0 : index
    %c0_6 = arith.constant 0 : index
    %c0_7 = arith.constant 0 : index
    %2 = vector.load %arg2[%c0_5, %c0_6, %c0_7] : memref<2x96x1xf32, #tpu.memory_space<vmem>>, vector<2x96x1xf32>
    %3 = vector.extract_strided_slice %2 {offsets = [0, 0, 0], sizes = [2, 32, 1], strides = [1, 1, 1]} : vector<2x96x1xf32> to vector<2x32x1xf32>
    %4 = vector.extract_strided_slice %2 {offsets = [0, 32, 0], sizes = [2, 32, 1], strides = [1, 1, 1]} : vector<2x96x1xf32> to vector<2x32x1xf32>
    %5 = vector.extract_strided_slice %2 {offsets = [0, 64, 0], sizes = [2, 32, 1], strides = [1, 1, 1]} : vector<2x96x1xf32> to vector<2x32x1xf32>
    %6 = vector.broadcast %3 : vector<2x32x1xf32> to vector<2x32x8xf32>
    %7 = arith.mulf %1, %6 : vector<2x32x8xf32>
    %cst = arith.constant dense<0.000000e+00> : vector<2x8xf32>
    %8 = vector.multi_reduction <add>, %7, %cst [1] : vector<2x32x8xf32> to vector<2x8xf32>
    %9 = vector.shape_cast %8 : vector<2x8xf32> to vector<2x1x8xf32>
    %10 = vector.broadcast %4 : vector<2x32x1xf32> to vector<2x32x16xf32>
    %11 = arith.mulf %0, %10 : vector<2x32x16xf32>
    %cst_8 = arith.constant dense<0.000000e+00> : vector<2x16xf32>
    %12 = vector.multi_reduction <add>, %11, %cst_8 [1] : vector<2x32x16xf32> to vector<2x16xf32>
    %13 = vector.shape_cast %12 : vector<2x16xf32> to vector<2x16x1xf32>
    %14 = vector.broadcast %5 : vector<2x32x1xf32> to vector<2x32x16xf32>
    %15 = arith.mulf %0, %14 : vector<2x32x16xf32>
    %16 = tpu.transpose %15, [0, 2, 1] : vector<2x32x16xf32> -> vector<2x16x32xf32>
    "tpu.trace_start"() <{level = 10 : i32, message = "bid,bdj->bij"}> : () -> ()
    %cst_9 = arith.constant dense<0.000000e+00> : vector<2x16x8xf32>
    %17 = tpu.matmul %16, %1, %cst_9 {dimension_numbers = #tpu.dot_dimension_numbers<[2], [1], [1], [2], [0, 0, 0, 1, 1, 2], [0], [0]>} : vector<2x16x32xf32>, vector<2x32x8xf32>, vector<2x16x8xf32> -> vector<2x16x8xf32>
    "tpu.trace_stop"() : () -> ()
    %18 = vector.broadcast %13 : vector<2x16x1xf32> to vector<2x16x8xf32>
    %19 = arith.addf %17, %18 : vector<2x16x8xf32>
    %20 = vector.broadcast %9 : vector<2x1x8xf32> to vector<2x16x8xf32>
    %21 = arith.addf %19, %20 : vector<2x16x8xf32>
    %cst_10 = arith.constant dense<0xFF800000> : vector<2x16xf32>
    %22 = vector.multi_reduction <maximumf>, %21, %cst_10 [2] : vector<2x16x8xf32> to vector<2x16xf32>
    %23 = vector.shape_cast %22 : vector<2x16xf32> to vector<2x16x1xf32>
    %24 = vector.broadcast %23 : vector<2x16x1xf32> to vector<2x16x8xf32>
    %25 = arith.subf %21, %24 : vector<2x16x8xf32>
    %26 = math.exp %25 : vector<2x16x8xf32>
    %cst_11 = arith.constant dense<0.000000e+00> : vector<2x16xf32>
    %27 = vector.multi_reduction <add>, %26, %cst_11 [2] : vector<2x16x8xf32> to vector<2x16xf32>
    %28 = vector.shape_cast %27 : vector<2x16xf32> to vector<2x16x1xf32>
    %29 = vector.broadcast %28 : vector<2x16x1xf32> to vector<2x16x8xf32>
    %30 = arith.divf %26, %29 : vector<2x16x8xf32>
    %cst_12 = arith.constant dense<0xFF800000> : vector<2x8xf32>
    %31 = vector.multi_reduction <maximumf>, %21, %cst_12 [1] : vector<2x16x8xf32> to vector<2x8xf32>
    %32 = vector.shape_cast %31 : vector<2x8xf32> to vector<2x1x8xf32>
    %33 = vector.broadcast %32 : vector<2x1x8xf32> to vector<2x16x8xf32>
    %34 = arith.subf %21, %33 : vector<2x16x8xf32>
    %35 = math.exp %34 : vector<2x16x8xf32>
    %cst_13 = arith.constant dense<0.000000e+00> : vector<2x8xf32>
    %36 = vector.multi_reduction <add>, %35, %cst_13 [1] : vector<2x16x8xf32> to vector<2x8xf32>
    %37 = vector.shape_cast %36 : vector<2x8xf32> to vector<2x1x8xf32>
    %38 = vector.broadcast %37 : vector<2x1x8xf32> to vector<2x16x8xf32>
    %39 = arith.divf %35, %38 : vector<2x16x8xf32>
    "tpu.trace_start"() <{level = 10 : i32, message = "bdj,bij->bdi"}> : () -> ()
    %cst_14 = arith.constant dense<0.000000e+00> : vector<2x32x16xf32>
    %40 = tpu.matmul %1, %30, %cst_14 {dimension_numbers = #tpu.dot_dimension_numbers<[2], [2], [1], [1], [0, 0, 0, 1, 1, 1], [0], [0]>} : vector<2x32x8xf32>, vector<2x16x8xf32>, vector<2x32x16xf32> -> vector<2x32x16xf32>
    "tpu.trace_stop"() : () -> ()
    "tpu.trace_start"() <{level = 10 : i32, message = "bdk,bkj->bdj"}> : () -> ()
    %cst_15 = arith.constant dense<0.000000e+00> : vector<2x32x8xf32>
    %41 = tpu.matmul %0, %39, %cst_15 {dimension_numbers = #tpu.dot_dimension_numbers<[2], [1], [1], [2], [0, 0, 0, 1, 1, 2], [0], [0]>} : vector<2x32x16xf32>, vector<2x16x8xf32>, vector<2x32x8xf32> -> vector<2x32x8xf32>
    "tpu.trace_stop"() : () -> ()
    "tpu.trace_start"() <{level = 10 : i32, message = "bdj,bij->bdi"}> : () -> ()
    %cst_16 = arith.constant dense<0.000000e+00> : vector<2x32x16xf32>
    %42 = tpu.matmul %41, %30, %cst_16 {dimension_numbers = #tpu.dot_dimension_numbers<[2], [2], [1], [1], [0, 0, 0, 1, 1, 1], [0], [0]>} : vector<2x32x8xf32>, vector<2x16x8xf32>, vector<2x32x16xf32> -> vector<2x32x16xf32>
    "tpu.trace_stop"() : () -> ()
    %43 = arith.mulf %0, %40 : vector<2x32x16xf32>
    %44 = arith.mulf %0, %42 : vector<2x32x16xf32>
    %45 = tpu.concatenate %0, %40, %43, %44 in 1 : vector<2x32x16xf32>, vector<2x32x16xf32>, vector<2x32x16xf32>, vector<2x32x16xf32> -> vector<2x128x16xf32>
    %c0_17 = arith.constant 0 : index
    %c0_18 = arith.constant 0 : index
    %c0_19 = arith.constant 0 : index
    %46 = vector.load %arg3[%c0_17, %c0_18, %c0_19] : memref<2x128x16xf32, #tpu.memory_space<vmem>>, vector<2x128x16xf32>
    tpu.vector_store %arg3[%c0_17, %c0_18, %c0_19], %45 {strides = array<i32>} : memref<2x128x16xf32, #tpu.memory_space<vmem>>, vector<2x128x16xf32>,
    return
  }
}

</mosaic_0001>

<llo_original>
// kernel: cq_attention.1
$region0: #{cq_attention.1}
  #allocation0 [shape = 'u32[]', space=smem, size = 0x4, offset = 0x4, fixed_abs, tag = 'smem constant byte address 0x4 - core index']
  #allocation1 [shape = 'u32[144,128]{1,0:T(1,128)}', space=vmem, size = 0x12000, scoped, tag = 'internal scratch']
  %s0 = inlined_call_operand.vmem [shape: f32[2,32,16], index: 0, kind: input, shape index: {}]
  %s1 = inlined_call_operand.vmem [shape: f32[2,32,8], index: 1, kind: input, shape index: {}]
  %s2 = inlined_call_operand.vmem [shape: f32[2,96,1], index: 2, kind: input, shape index: {}]
  %s3 = inlined_call_operand.vmem [shape: f32[2,128,16], index: 3, kind: output, shape index: {}]
  %s4 = sld [smem:[#allocation0]]
  $region22: #{cq_attention.1} parent=0
    _
  %s6 = ssub.s32 1, %s4
  %s7 = scalar_select 0, %s6, %s4
  // Predicated region
  $region2: #{cq_attention.1} parent=0 // pred_check
    _
  $region3: #{cq_attention.1} parent=0 // pred_check_branch
    %9 = sbr.rel (0) target = $region5
  $region4: #{cq_attention.1} parent=0 // pred_region
    _
  $region5: #{cq_attention.1} parent=0 // pred_fallthru
    _
  // Predicated region
  $region6: #{cq_attention.1} parent=0 // pred_check
    _
  $region7: #{cq_attention.1} parent=0 // pred_check_branch
    %11 = sbr.rel (0) target = $region9
  $region8: #{cq_attention.1} parent=0 // pred_region
    _
  $region9: #{cq_attention.1} parent=0 // pred_fallthru
    _
  // Predicated region
  $region10: #{cq_attention.1} parent=0 // pred_check
    _
  $region11: #{cq_attention.1} parent=0 // pred_check_branch
    %13 = sbr.rel (0) target = $region13
  $region12: #{cq_attention.1} parent=0 // pred_region
    _
  $region13: #{cq_attention.1} parent=0 // pred_fallthru
    _
  %v14 = vld [vmem:[%s0] sm:$0xff]
  %v15 = vld [vmem:[%s0 + $0x8] sm:$0xff]
  %v16 = vld [vmem:[%s0 + $0x10] sm:$0xff]
  %v17 = vld [vmem:[%s0 + $0x18] sm:$0xff]
  %v18 = vld [vmem:[%s0 + $0x20] sm:$0xff]
  %v19 = vld [vmem:[%s0 + $0x28] sm:$0xff]
  %v20 = vld [vmem:[%s0 + $0x30] sm:$0xff]
  %v21 = vld [vmem:[%s0 + $0x38] sm:$0xff]
  %v22 = vld [vmem:[%s1] sm:$0xff]
  %v23 = vld [vmem:[%s1 + $0x8] sm:$0xff]
  %v24 = vld [vmem:[%s1 + $0x10] sm:$0xff]
  %v25 = vld [vmem:[%s1 + $0x18] sm:$0xff]
  %v26 = vld [vmem:[%s1 + $0x20] sm:$0xff]
  %v27 = vld [vmem:[%s1 + $0x28] sm:$0xff]
  %v28 = vld [vmem:[%s1 + $0x30] sm:$0xff]
  %v29 = vld [vmem:[%s1 + $0x38] sm:$0xff]
  %v30 = vld [vmem:[%s2] sm:$0xff]
  %v31 = vld [vmem:[%s2 + $0x8] sm:$0xff]
  %v32 = vld [vmem:[%s2 + $0x10] sm:$0xff]
  %v33 = vld [vmem:[%s2 + $0x18] sm:$0xff]
  %v34 = vld [vmem:[%s2 + $0x20] sm:$0xff]
  %v35 = vld [vmem:[%s2 + $0x28] sm:$0xff]
  %v36 = vld [vmem:[%s2 + $0x30] sm:$0xff]
  %v37 = vld [vmem:[%s2 + $0x38] sm:$0xff]
  %v38 = vld [vmem:[%s2 + $0x40] sm:$0xff]
  %v39 = vld [vmem:[%s2 + $0x48] sm:$0xff]
  %v40 = vld [vmem:[%s2 + $0x50] sm:$0xff]
  %v41 = vld [vmem:[%s2 + $0x58] sm:$0xff]
  %v42 = vld [vmem:[%s2 + $0x60] sm:$0xff]
  %v43 = vld [vmem:[%s2 + $0x68] sm:$0xff]
  %v44 = vld [vmem:[%s2 + $0x70] sm:$0xff]
  %v45 = vld [vmem:[%s2 + $0x78] sm:$0xff]
  %v46 = vld [vmem:[%s2 + $0x80] sm:$0xff]
  %v47 = vld [vmem:[%s2 + $0x88] sm:$0xff]
  %v48 = vld [vmem:[%s2 + $0x90] sm:$0xff]
  %v49 = vld [vmem:[%s2 + $0x98] sm:$0xff]
  %v50 = vld [vmem:[%s2 + $0xa0] sm:$0xff]
  %v51 = vld [vmem:[%s2 + $0xa8] sm:$0xff]
  %v52 = vld [vmem:[%s2 + $0xb0] sm:$0xff]
  %v53 = vld [vmem:[%s2 + $0xb8] sm:$0xff]
  %55 = vset.pattern.permute.xlu0 0
  %56 = vperm.xlu0 %55, %v30
  %v57 = vpop.permute.xlu0 %56
  %60 = vset.pattern.permute.xlu0 0
  %61 = vperm.xlu0 %60, %v31
  %v62 = vpop.permute.xlu0 %61
  %65 = vset.pattern.permute.xlu0 0
  %66 = vperm.xlu0 %65, %v32
  %v67 = vpop.permute.xlu0 %66
  %70 = vset.pattern.permute.xlu0 0
  %71 = vperm.xlu0 %70, %v33
  %v72 = vpop.permute.xlu0 %71
  %75 = vset.pattern.permute.xlu0 0
  %76 = vperm.xlu0 %75, %v42
  %v77 = vpop.permute.xlu0 %76
  %80 = vset.pattern.permute.xlu0 0
  %81 = vperm.xlu0 %80, %v43
  %v82 = vpop.permute.xlu0 %81
  %85 = vset.pattern.permute.xlu0 0
  %86 = vperm.xlu0 %85, %v44
  %v87 = vpop.permute.xlu0 %86
  %90 = vset.pattern.permute.xlu0 0
  %91 = vperm.xlu0 %90, %v45
  %v92 = vpop.permute.xlu0 %91
  %v94 = vmul.f32 %v22, %v57
  %v95 = vmul.f32 %v23, %v62
  %v96 = vmul.f32 %v24, %v67
  %v97 = vmul.f32 %v25, %v72
  %v98 = vmul.f32 %v26, %v77
  %v99 = vmul.f32 %v27, %v82
  %v100 = vmul.f32 %v28, %v87
  %v101 = vmul.f32 %v29, %v92
  %vm102 = vcmask 64512
  %v103 = vsel %vm102, %v94, 0.0
  %v104 = vsel %vm102, %v95, 0.0
  %v105 = vadd.f32 %v103, %v104
  %v106 = vsel %vm102, %v96, 0.0
  %v107 = vadd.f32 %v105, %v106
  %v108 = vsel %vm102, %v97, 0.0
  %v109 = vadd.f32 %v107, %v108
  %v110 = vrot.slane %v109, 4
  %v111 = vadd.f32 %v109, %v110
  %v112 = vrot.slane %v111, 2
  %v113 = vadd.f32 %v111, %v112
  %v114 = vrot.slane %v113, 1
  %v115 = vadd.f32 %v113, %v114
  %v116 = vsel %vm102, %v98, 0.0
  %v117 = vsel %vm102, %v99, 0.0
  %v118 = vadd.f32 %v116, %v117
  %v119 = vsel %vm102, %v100, 0.0
  %v120 = vadd.f32 %v118, %v119
  %v121 = vsel %vm102, %v101, 0.0
  %v122 = vadd.f32 %v120, %v121
  %v123 = vrot.slane %v122, 4
  %v124 = vadd.f32 %v122, %v123
  %v125 = vrot.slane %v124, 2
  %v126 = vadd.f32 %v124, %v125
  %v127 = vrot.slane %v126, 1
  %v128 = vadd.f32 %v126, %v127
  %130 = vset.pattern.permute.xlu0 0
  %131 = vperm.xlu0 %130, %v34
  %v132 = vpop.permute.xlu0 %131
  %135 = vset.pattern.permute.xlu0 0
  %136 = vperm.xlu0 %135, %v35
  %v137 = vpop.permute.xlu0 %136
  %140 = vset.pattern.permute.xlu0 0
  %141 = vperm.xlu0 %140, %v36
  %v142 = vpop.permute.xlu0 %141
  %145 = vset.pattern.permute.xlu0 0
  %146 = vperm.xlu0 %145, %v37
  %v147 = vpop.permute.xlu0 %146
  %150 = vset.pattern.permute.xlu0 0
  %151 = vperm.xlu0 %150, %v46
  %v152 = vpop.permute.xlu0 %151
  %155 = vset.pattern.permute.xlu0 0
  %156 = vperm.xlu0 %155, %v47
  %v157 = vpop.permute.xlu0 %156
  %160 = vset.pattern.permute.xlu0 0
  %161 = vperm.xlu0 %160, %v48
  %v162 = vpop.permute.xlu0 %161
  %165 = vset.pattern.permute.xlu0 0
  %166 = vperm.xlu0 %165, %v49
  %v167 = vpop.permute.xlu0 %166
  %v169 = vmul.f32 %v14, %v132
  %v170 = vmul.f32 %v15, %v137
  %v171 = vmul.f32 %v16, %v142
  %v172 = vmul.f32 %v17, %v147
  %v173 = vmul.f32 %v18, %v152
  %v174 = vmul.f32 %v19, %v157
  %v175 = vmul.f32 %v20, %v162
  %v176 = vmul.f32 %v21, %v167
  %vm177 = vcmask 130048
  %v178 = vsel %vm177, %v169, 0.0
  %v179 = vsel %vm177, %v170, 0.0
  %v180 = vadd.f32 %v178, %v179
  %v181 = vsel %vm177, %v171, 0.0
  %v182 = vadd.f32 %v180, %v181
  %v183 = vsel %vm177, %v172, 0.0
  %v184 = vadd.f32 %v182, %v183
  %v185 = vrot.slane %v184, 4
  %v186 = vadd.f32 %v184, %v185
  %v187 = vrot.slane %v186, 2
  %v188 = vadd.f32 %v186, %v187
  %v189 = vrot.slane %v188, 1
  %v190 = vadd.f32 %v188, %v189
  %v191 = vsel %vm177, %v173, 0.0
  %v192 = vsel %vm177, %v174, 0.0
  %v193 = vadd.f32 %v191, %v192
  %v194 = vsel %vm177, %v175, 0.0
  %v195 = vadd.f32 %v193, %v194
  %v196 = vsel %vm177, %v176, 0.0
  %v197 = vadd.f32 %v195, %v196
  %v198 = vrot.slane %v197, 4
  %v199 = vadd.f32 %v197, %v198
  %v200 = vrot.slane %v199, 2
  %v201 = vadd.f32 %v199, %v200
  %v202 = vrot.slane %v201, 1
  %v203 = vadd.f32 %v201, %v202
  %205 = vbcast.lane.b32.xlu0 %v190, 256
  %v206 = vpop.permute.xlu0 %205
  %s208 = sor.u32 256, 8
  %209 = vbcast.lane.b32.xlu0 %v190, %s208
  %v210 = vpop.permute.xlu0 %209
  %212 = vbcast.lane.b32.xlu0 %v203, 256
  %v213 = vpop.permute.xlu0 %212
  %s215 = sor.u32 256, 8
  %216 = vbcast.lane.b32.xlu0 %v203, %s215
  %v217 = vpop.permute.xlu0 %216
  %219 = vset.pattern.permute.xlu0 0
  %220 = vperm.xlu0 %219, %v38
  %v221 = vpop.permute.xlu0 %220
  %224 = vset.pattern.permute.xlu0 0
  %225 = vperm.xlu0 %224, %v39
  %v226 = vpop.permute.xlu0 %225
  %229 = vset.pattern.permute.xlu0 0
  %230 = vperm.xlu0 %229, %v40
  %v231 = vpop.permute.xlu0 %230
  %234 = vset.pattern.permute.xlu0 0
  %235 = vperm.xlu0 %234, %v41
  %v236 = vpop.permute.xlu0 %235
  %239 = vset.pattern.permute.xlu0 0
  %240 = vperm.xlu0 %239, %v50
  %v241 = vpop.permute.xlu0 %240
  %244 = vset.pattern.permute.xlu0 0
  %245 = vperm.xlu0 %244, %v51
  %v246 = vpop.permute.xlu0 %245
  %249 = vset.pattern.permute.xlu0 0
  %250 = vperm.xlu0 %249, %v52
  %v251 = vpop.permute.xlu0 %250
  %254 = vset.pattern.permute.xlu0 0
  %255 = vperm.xlu0 %254, %v53
  %v256 = vpop.permute.xlu0 %255
  %v258 = vmul.f32 %v14, %v221
  %v259 = vmul.f32 %v15, %v226
  %v260 = vmul.f32 %v16, %v231
  %v261 = vmul.f32 %v17, %v236
  %v262 = vmul.f32 %v18, %v241
  %v263 = vmul.f32 %v19, %v246
  %v264 = vmul.f32 %v20, %v251
  %v265 = vmul.f32 %v21, %v256
  %266 = vxpose.xlu0.b32.start [1/16] %v258, 128
  %267 = vxpose.xlu0.b32.cont [2/16] %v259, 128
  %268 = vxpose.xlu0.b32.cont [3/16] %v260, 128
  %269 = vxpose.xlu0.b32.cont [4/16] %v261, 128
  %270 = vxpose.xlu0.b32.cont [5/16] 0.0, 128
  %271 = vxpose.xlu0.b32.cont [6/16] 0.0, 128
  %272 = vxpose.xlu0.b32.cont [7/16] 0.0, 128
  %273 = vxpose.xlu0.b32.cont [8/16] 0.0, 128
  %274 = vxpose.xlu0.b32.cont [9/16] 0.0, 128
  %275 = vxpose.xlu0.b32.cont [10/16] 0.0, 128
  %276 = vxpose.xlu0.b32.cont [11/16] 0.0, 128
  %277 = vxpose.xlu0.b32.cont [12/16] 0.0, 128
  %278 = vxpose.xlu0.b32.cont [13/16] 0.0, 128
  %279 = vxpose.xlu0.b32.cont [14/16] 0.0, 128
  %280 = vxpose.xlu0.b32.cont [15/16] 0.0, 128
  %281 = vxpose.xlu0.b32.end [16/16] 0.0, 128
  %v282 = vpop.trf.xlu0
  %v283 = vpop.trf.xlu0
  %v284 = vpop.trf.xlu0
  %v285 = vpop.trf.xlu0
  %v286 = vpop.trf.xlu0
  %v287 = vpop.trf.xlu0
  %v288 = vpop.trf.xlu0
  %v289 = vpop.trf.xlu0
  %v290 = vpop.trf.xlu0
  %v291 = vpop.trf.xlu0
  %v292 = vpop.trf.xlu0
  %v293 = vpop.trf.xlu0
  %v294 = vpop.trf.xlu0
  %v295 = vpop.trf.xlu0
  %v296 = vpop.trf.xlu0
  %v297 = vpop.trf.xlu0
  %298 = vxpose.xlu0.b32.start [1/16] %v262, 128
  %299 = vxpose.xlu0.b32.cont [2/16] %v263, 128
  %300 = vxpose.xlu0.b32.cont [3/16] %v264, 128
  %301 = vxpose.xlu0.b32.cont [4/16] %v265, 128
  %302 = vxpose.xlu0.b32.cont [5/16] 0.0, 128
  %303 = vxpose.xlu0.b32.cont [6/16] 0.0, 128
  %304 = vxpose.xlu0.b32.cont [7/16] 0.0, 128
  %305 = vxpose.xlu0.b32.cont [8/16] 0.0, 128
  %306 = vxpose.xlu0.b32.cont [9/16] 0.0, 128
  %307 = vxpose.xlu0.b32.cont [10/16] 0.0, 128
  %308 = vxpose.xlu0.b32.cont [11/16] 0.0, 128
  %309 = vxpose.xlu0.b32.cont [12/16] 0.0, 128
  %310 = vxpose.xlu0.b32.cont [13/16] 0.0, 128
  %311 = vxpose.xlu0.b32.cont [14/16] 0.0, 128
  %312 = vxpose.xlu0.b32.cont [15/16] 0.0, 128
  %313 = vxpose.xlu0.b32.end [16/16] 0.0, 128
  %v314 = vpop.trf.xlu0
  %v315 = vpop.trf.xlu0
  %v316 = vpop.trf.xlu0
  %v317 = vpop.trf.xlu0
  %v318 = vpop.trf.xlu0
  %v319 = vpop.trf.xlu0
  %v320 = vpop.trf.xlu0
  %v321 = vpop.trf.xlu0
  %v322 = vpop.trf.xlu0
  %v323 = vpop.trf.xlu0
  %v324 = vpop.trf.xlu0
  %v325 = vpop.trf.xlu0
  %v326 = vpop.trf.xlu0
  %v327 = vpop.trf.xlu0
  %v328 = vpop.trf.xlu0
  %v329 = vpop.trf.xlu0
  %vm330 = vcmask 261120
  %v332 = vsel %vm330, %v282, 0
  %v335 = vsel %vm330, %v283, 0
  %337 = vmatprep.subr.mxu0 0.0
  %338 = vmatpush1.msra.mxu0 0.0
  %339 = vmatprep.subr.mxu0 0.0
  %340 = vmatpush1.msra.mxu0 0.0
  %341 = vmatprep.subr.mxu0 0.0
  %342 = vmatpush1.msra.mxu0 0.0
  %343 = vmatprep.subr.mxu0 0.0
  %344 = vmatpush1.msra.mxu0 0.0
  %345 = vmatprep.subr.mxu0 0.0
  %346 = vmatpush1.msra.mxu0 0.0
  %347 = vmatprep.subr.mxu0 0.0
  %348 = vmatpush1.msra.mxu0 0.0
  %349 = vmatprep.subr.mxu0 0.0
  %350 = vmatpush1.msra.mxu0 0.0
  %351 = vmatprep.subr.mxu0 0.0
  %352 = vmatpush1.msra.mxu0 0.0
  %353 = vmatprep.subr.mxu0 0.0
  %354 = vmatpush1.msra.mxu0 0.0
  %355 = vmatprep.subr.mxu0 0.0
  %356 = vmatpush1.msra.mxu0 0.0
  %357 = vmatprep.subr.mxu0 0.0
  %358 = vmatpush1.msra.mxu0 0.0
  %359 = vmatprep.subr.mxu0 0.0
  %360 = vmatpush1.msra.mxu0 0.0
  %361 = vmatprep.subr.mxu0 0.0
  %362 = vmatpush1.msra.mxu0 %v25
  %363 = vmatprep.subr.mxu0 0.0
  %364 = vmatpush1.msra.mxu0 %v24
  %365 = vmatprep.subr.mxu0 0.0
  %366 = vmatpush1.msra.mxu0 %v23
  %367 = vmatprep.subr.mxu0 0.0
  %368 = vmatpush1.msra.mxu0 %v22
  %369 = vmatprep.subr.mxu0 0.0
  %370 = vmatpush2.msra.mxu0 0.0
  %371 = vmatprep.subr.mxu0 0.0
  %372 = vmatpush2.msra.mxu0 0.0
  %373 = vmatprep.subr.mxu0 0.0
  %374 = vmatpush2.msra.mxu0 0.0
  %375 = vmatprep.subr.mxu0 0.0
  %376 = vmatpush2.msra.mxu0 0.0
  %377 = vmatprep.subr.mxu0 0.0
  %378 = vmatpush2.msra.mxu0 0.0
  %379 = vmatprep.subr.mxu0 0.0
  %380 = vmatpush2.msra.mxu0 0.0
  %381 = vmatprep.subr.mxu0 0.0
  %382 = vmatpush2.msra.mxu0 0.0
  %383 = vmatprep.subr.mxu0 0.0
  %384 = vmatpush2.msra.mxu0 0.0
  %385 = vmatprep.subr.mxu0 0.0
  %386 = vmatpush2.msra.mxu0 0.0
  %387 = vmatprep.subr.mxu0 0.0
  %388 = vmatpush2.msra.mxu0 0.0
  %389 = vmatprep.subr.mxu0 0.0
  %390 = vmatpush2.msra.mxu0 0.0
  %391 = vmatprep.subr.mxu0 0.0
  %392 = vmatpush2.msra.mxu0 0.0
  %393 = vmatprep.subr.mxu0 0.0
  %394 = vmatpush2.msra.mxu0 0.0
  %395 = vmatprep.subr.mxu0 0.0
  %396 = vmatpush2.msra.mxu0 0.0
  %397 = vmatprep.subr.mxu0 0.0
  %398 = vmatpush2.msra.mxu0 0.0
  %399 = vmatprep.subr.mxu0 0.0
  %400 = vmatpush2.msra.mxu0 0.0
  %401 = vmatprep.mubr.f32.mxu0 0.0
  %402 = vmatmul.mubr.f32.gmra.mxu0 %v332
  %v403 = vpop.f32.mrf.mxu0
  %v404 = vadd.f32 %v206, %v403
  %v405 = vpop.f32.mrf.mxu0
  %406 = vmatprep.mubr.f32.mxu0 0.0
  %407 = vmatmul.mubr.f32.gmra.mxu0 %v335
  %v408 = vpop.f32.mrf.mxu0
  %v409 = vadd.f32 %v210, %v408
  %v410 = vpop.f32.mrf.mxu0
  %411 = vdwg.mxu0
  %v413 = vsel %vm330, %v314, 0
  %v416 = vsel %vm330, %v315, 0
  %418 = vmatprep.subr.mxu0 0.0
  %419 = vmatpush1.msra.mxu0 0.0
  %420 = vmatprep.subr.mxu0 0.0
  %421 = vmatpush1.msra.mxu0 0.0
  %422 = vmatprep.subr.mxu0 0.0
  %423 = vmatpush1.msra.mxu0 0.0
  %424 = vmatprep.subr.mxu0 0.0
  %425 = vmatpush1.msra.mxu0 0.0
  %426 = vmatprep.subr.mxu0 0.0
  %427 = vmatpush1.msra.mxu0 0.0
  %428 = vmatprep.subr.mxu0 0.0
  %429 = vmatpush1.msra.mxu0 0.0
  %430 = vmatprep.subr.mxu0 0.0
  %431 = vmatpush1.msra.mxu0 0.0
  %432 = vmatprep.subr.mxu0 0.0
  %433 = vmatpush1.msra.mxu0 0.0
  %434 = vmatprep.subr.mxu0 0.0
  %435 = vmatpush1.msra.mxu0 0.0
  %436 = vmatprep.subr.mxu0 0.0
  %437 = vmatpush1.msra.mxu0 0.0
  %438 = vmatprep.subr.mxu0 0.0
  %439 = vmatpush1.msra.mxu0 0.0
  %440 = vmatprep.subr.mxu0 0.0
  %441 = vmatpush1.msra.mxu0 0.0
  %442 = vmatprep.subr.mxu0 0.0
  %443 = vmatpush1.msra.mxu0 %v29
  %444 = vmatprep.subr.mxu0 0.0
  %445 = vmatpush1.msra.mxu0 %v28
  %446 = vmatprep.subr.mxu0 0.0
  %447 = vmatpush1.msra.mxu0 %v27
  %448 = vmatprep.subr.mxu0 0.0
  %449 = vmatpush1.msra.mxu0 %v26
  %450 = vmatprep.subr.mxu0 0.0
  %451 = vmatpush2.msra.mxu0 0.0
  %452 = vmatprep.subr.mxu0 0.0
  %453 = vmatpush2.msra.mxu0 0.0
  %454 = vmatprep.subr.mxu0 0.0
  %455 = vmatpush2.msra.mxu0 0.0
  %456 = vmatprep.subr.mxu0 0.0
  %457 = vmatpush2.msra.mxu0 0.0
  %458 = vmatprep.subr.mxu0 0.0
  %459 = vmatpush2.msra.mxu0 0.0
  %460 = vmatprep.subr.mxu0 0.0
  %461 = vmatpush2.msra.mxu0 0.0
  %462 = vmatprep.subr.mxu0 0.0
  %463 = vmatpush2.msra.mxu0 0.0
  %464 = vmatprep.subr.mxu0 0.0
  %465 = vmatpush2.msra.mxu0 0.0
  %466 = vmatprep.subr.mxu0 0.0
  %467 = vmatpush2.msra.mxu0 0.0
  %468 = vmatprep.subr.mxu0 0.0
  %469 = vmatpush2.msra.mxu0 0.0
  %470 = vmatprep.subr.mxu0 0.0
  %471 = vmatpush2.msra.mxu0 0.0
  %472 = vmatprep.subr.mxu0 0.0
  %473 = vmatpush2.msra.mxu0 0.0
  %474 = vmatprep.subr.mxu0 0.0
  %475 = vmatpush2.msra.mxu0 0.0
  %476 = vmatprep.subr.mxu0 0.0
  %477 = vmatpush2.msra.mxu0 0.0
  %478 = vmatprep.subr.mxu0 0.0
  %479 = vmatpush2.msra.mxu0 0.0
  %480 = vmatprep.subr.mxu0 0.0
  %481 = vmatpush2.msra.mxu0 0.0
  %482 = vmatprep.mubr.f32.mxu0 0.0
  %483 = vmatmul.mubr.f32.gmra.mxu0 %v413
  %v484 = vpop.f32.mrf.mxu0
  %v485 = vadd.f32 %v213, %v484
  %v486 = vpop.f32.mrf.mxu0
  %487 = vmatprep.mubr.f32.mxu0 0.0
  %488 = vmatmul.mubr.f32.gmra.mxu0 %v416
  %v489 = vpop.f32.mrf.mxu0
  %v490 = vadd.f32 %v217, %v489
  %v491 = vpop.f32.mrf.mxu0
  %492 = vdwg.mxu0
  %v493 = vadd.f32 %v404, %v115
  %v494 = vadd.f32 %v409, %v115
  %v495 = vadd.f32 %v485, %v128
  %v496 = vadd.f32 %v490, %v128
  %v497 = vsel %vm102, %v493, -inf
  %498 = vmax.xlane.f32.xlu0 %v497
  %v499 = vpop.xlane.xlu0 %498
  %v500 = vsel %vm102, %v494, -inf
  %501 = vmax.xlane.f32.xlu0 %v500
  %v502 = vpop.xlane.xlu0 %501
  %v503 = vsel %vm102, %v495, -inf
  %504 = vmax.xlane.f32.xlu0 %v503
  %v505 = vpop.xlane.xlu0 %504
  %v506 = vsel %vm102, %v496, -inf
  %507 = vmax.xlane.f32.xlu0 %v506
  %v508 = vpop.xlane.xlu0 %507
  %v509 = vsub.f32 %v493, %v499
  %v510 = vsub.f32 %v494, %v502
  %v511 = vsub.f32 %v495, %v505
  %v512 = vsub.f32 %v496, %v508
  %v513 = vmul.f32 %v509, 1.442695
  %v514 = vpow.pop %v513
  %v515 = vmul.f32 %v510, 1.442695
  %v516 = vpow.pop %v515
  %v517 = vmul.f32 %v511, 1.442695
  %v518 = vpow.pop %v517
  %v519 = vmul.f32 %v512, 1.442695
  %v520 = vpow.pop %v519
  %v521 = vsel %vm102, %v514, 0.0
  %522 = vadd.xlane.f32.xlu0 %v521
  %v523 = vpop.xlane.xlu0 %522
  %v524 = vsel %vm102, %v516, 0.0
  %525 = vadd.xlane.f32.xlu0 %v524
  %v526 = vpop.xlane.xlu0 %525
  %v527 = vsel %vm102, %v518, 0.0
  %528 = vadd.xlane.f32.xlu0 %v527
  %v529 = vpop.xlane.xlu0 %528
  %v530 = vsel %vm102, %v520, 0.0
  %531 = vadd.xlane.f32.xlu0 %v530
  %v532 = vpop.xlane.xlu0 %531
  %v533 = vrcp.pop %v523
  %v534 = vmul.f32 %v514, %v533
  %v535 = vrcp.pop %v526
  %v536 = vmul.f32 %v516, %v535
  %v537 = vrcp.pop %v529
  %v538 = vmul.f32 %v518, %v537
  %v539 = vrcp.pop %v532
  %v540 = vmul.f32 %v520, %v539
  %v541 = vmax.f32 %v497, %v500
  %v542 = vrot.slane %v541, 4
  %v543 = vmax.f32 %v541, %v542
  %v544 = vrot.slane %v543, 2
  %v545 = vmax.f32 %v543, %v544
  %v546 = vrot.slane %v545, 1
  %v547 = vmax.f32 %v545, %v546
  %v548 = vmax.f32 %v503, %v506
  %v549 = vrot.slane %v548, 4
  %v550 = vmax.f32 %v548, %v549
  %v551 = vrot.slane %v550, 2
  %v552 = vmax.f32 %v550, %v551
  %v553 = vrot.slane %v552, 1
  %v554 = vmax.f32 %v552, %v553
  %v555 = vsub.f32 %v493, %v547
  %v556 = vsub.f32 %v494, %v547
  %v557 = vsub.f32 %v495, %v554
  %v558 = vsub.f32 %v496, %v554
  %v559 = vmul.f32 %v555, 1.442695
  %v560 = vpow.pop %v559
  %v561 = vmul.f32 %v556, 1.442695
  %v562 = vpow.pop %v561
  %v563 = vmul.f32 %v557, 1.442695
  %v564 = vpow.pop %v563
  %v565 = vmul.f32 %v558, 1.442695
  %v566 = vpow.pop %v565
  %v567 = vsel %vm102, %v560, 0.0
  %v568 = vsel %vm102, %v562, 0.0
  %v569 = vadd.f32 %v567, %v568
  %v570 = vrot.slane %v569, 4
  %v571 = vadd.f32 %v569, %v570
  %v572 = vrot.slane %v571, 2
  %v573 = vadd.f32 %v571, %v572
  %v574 = vrot.slane %v573, 1
  %v575 = vadd.f32 %v573, %v574
  %v576 = vsel %vm102, %v564, 0.0
  %v577 = vsel %vm102, %v566, 0.0
  %v578 = vadd.f32 %v576, %v577
  %v579 = vrot.slane %v578, 4
  %v580 = vadd.f32 %v578, %v579
  %v581 = vrot.slane %v580, 2
  %v582 = vadd.f32 %v580, %v581
  %v583 = vrot.slane %v582, 1
  %v584 = vadd.f32 %v582, %v583
  %v585 = vrcp.pop %v575
  %v586 = vmul.f32 %v560, %v585
  %v587 = vmul.f32 %v562, %v585
  %v588 = vrcp.pop %v584
  %v589 = vmul.f32 %v564, %v588
  %v590 = vmul.f32 %v566, %v588
  %v592 = vsel %vm102, %v22, 0
  %v595 = vsel %vm102, %v23, 0
  %v598 = vsel %vm102, %v24, 0
  %v601 = vsel %vm102, %v25, 0
  %v604 = vsel %vm102, %v534, 0
  %v607 = vsel %vm102, %v536, 0
  %609 = vmatprep.subr.mxu0 0.0
  %610 = vmatpush1.xpose.msra.mxu0 0.0
  %611 = vmatprep.subr.mxu0 0.0
  %612 = vmatpush1.xpose.msra.mxu0 0.0
  %613 = vmatprep.subr.mxu0 0.0
  %614 = vmatpush1.xpose.msra.mxu0 0.0
  %615 = vmatprep.subr.mxu0 0.0
  %616 = vmatpush1.xpose.msra.mxu0 0.0
  %617 = vmatprep.subr.mxu0 0.0
  %618 = vmatpush1.xpose.msra.mxu0 0.0
  %619 = vmatprep.subr.mxu0 0.0
  %620 = vmatpush1.xpose.msra.mxu0 0.0
  %621 = vmatprep.subr.mxu0 0.0
  %622 = vmatpush1.xpose.msra.mxu0 0.0
  %623 = vmatprep.subr.mxu0 0.0
  %624 = vmatpush1.xpose.msra.mxu0 0.0
  %625 = vmatprep.subr.mxu0 0.0
  %626 = vmatpush1.xpose.msra.mxu0 0.0
  %627 = vmatprep.subr.mxu0 0.0
  %628 = vmatpush1.xpose.msra.mxu0 0.0
  %629 = vmatprep.subr.mxu0 0.0
  %630 = vmatpush1.xpose.msra.mxu0 0.0
  %631 = vmatprep.subr.mxu0 0.0
  %632 = vmatpush1.xpose.msra.mxu0 0.0
  %633 = vmatprep.subr.mxu0 0.0
  %634 = vmatpush1.xpose.msra.mxu0 0.0
  %635 = vmatprep.subr.mxu0 0.0
  %636 = vmatpush1.xpose.msra.mxu0 0.0
  %637 = vmatprep.subr.mxu0 0.0
  %638 = vmatpush1.xpose.msra.mxu0 %v607
  %639 = vmatprep.subr.mxu0 0.0
  %640 = vmatpush1.xpose.msra.mxu0 %v604
  %641 = vmatprep.subr.mxu0 0.0
  %642 = vmatpush2.xpose.msra.mxu0 0.0
  %643 = vmatprep.subr.mxu0 0.0
  %644 = vmatpush2.xpose.msra.mxu0 0.0
  %645 = vmatprep.subr.mxu0 0.0
  %646 = vmatpush2.xpose.msra.mxu0 0.0
  %647 = vmatprep.subr.mxu0 0.0
  %648 = vmatpush2.xpose.msra.mxu0 0.0
  %649 = vmatprep.subr.mxu0 0.0
  %650 = vmatpush2.xpose.msra.mxu0 0.0
  %651 = vmatprep.subr.mxu0 0.0
  %652 = vmatpush2.xpose.msra.mxu0 0.0
  %653 = vmatprep.subr.mxu0 0.0
  %654 = vmatpush2.xpose.msra.mxu0 0.0
  %655 = vmatprep.subr.mxu0 0.0
  %656 = vmatpush2.xpose.msra.mxu0 0.0
  %657 = vmatprep.subr.mxu0 0.0
  %658 = vmatpush2.xpose.msra.mxu0 0.0
  %659 = vmatprep.subr.mxu0 0.0
  %660 = vmatpush2.xpose.msra.mxu0 0.0
  %661 = vmatprep.subr.mxu0 0.0
  %662 = vmatpush2.xpose.msra.mxu0 0.0
  %663 = vmatprep.subr.mxu0 0.0
  %664 = vmatpush2.xpose.msra.mxu0 0.0
  %665 = vmatprep.subr.mxu0 0.0
  %666 = vmatpush2.xpose.msra.mxu0 0.0
  %667 = vmatprep.subr.mxu0 0.0
  %668 = vmatpush2.xpose.msra.mxu0 0.0
  %669 = vmatprep.subr.mxu0 0.0
  %670 = vmatpush2.xpose.msra.mxu0 0.0
  %671 = vmatprep.subr.mxu0 0.0
  %672 = vmatpush2.xpose.msra.mxu0 0.0
  %673 = vmatprep.mubr.f32.mxu0 0.0
  %674 = vmatmul.mubr.f32.gmra.mxu0 %v592
  %v675 = vpop.f32.mrf.mxu0
  %v676 = vadd.f32 0.0, %v675
  %v677 = vpop.f32.mrf.mxu0
  %678 = vmatprep.mubr.f32.mxu0 0.0
  %679 = vmatmul.mubr.f32.gmra.mxu0 %v595
  %v680 = vpop.f32.mrf.mxu0
  %v681 = vadd.f32 0.0, %v680
  %v682 = vpop.f32.mrf.mxu0
  %683 = vmatprep.mubr.f32.mxu0 0.0
  %684 = vmatmul.mubr.f32.gmra.mxu0 %v598
  %v685 = vpop.f32.mrf.mxu0
  %v686 = vadd.f32 0.0, %v685
  %v687 = vpop.f32.mrf.mxu0
  %688 = vmatprep.mubr.f32.mxu0 0.0
  %689 = vmatmul.mubr.f32.gmra.mxu0 %v601
  %v690 = vpop.f32.mrf.mxu0
  %v691 = vadd.f32 0.0, %v690
  %v692 = vpop.f32.mrf.mxu0
  %693 = vdwg.mxu0
  %v695 = vsel %vm102, %v26, 0
  %v698 = vsel %vm102, %v27, 0
  %v701 = vsel %vm102, %v28, 0
  %v704 = vsel %vm102, %v29, 0
  %v707 = vsel %vm102, %v538, 0
  %v710 = vsel %vm102, %v540, 0
  %712 = vmatprep.subr.mxu0 0.0
  %713 = vmatpush1.xpose.msra.mxu0 0.0
  %714 = vmatprep.subr.mxu0 0.0
  %715 = vmatpush1.xpose.msra.mxu0 0.0
  %716 = vmatprep.subr.mxu0 0.0
  %717 = vmatpush1.xpose.msra.mxu0 0.0
  %718 = vmatprep.subr.mxu0 0.0
  %719 = vmatpush1.xpose.msra.mxu0 0.0
  %720 = vmatprep.subr.mxu0 0.0
  %721 = vmatpush1.xpose.msra.mxu0 0.0
  %722 = vmatprep.subr.mxu0 0.0
  %723 = vmatpush1.xpose.msra.mxu0 0.0
  %724 = vmatprep.subr.mxu0 0.0
  %725 = vmatpush1.xpose.msra.mxu0 0.0
  %726 = vmatprep.subr.mxu0 0.0
  %727 = vmatpush1.xpose.msra.mxu0 0.0
  %728 = vmatprep.subr.mxu0 0.0
  %729 = vmatpush1.xpose.msra.mxu0 0.0
  %730 = vmatprep.subr.mxu0 0.0
  %731 = vmatpush1.xpose.msra.mxu0 0.0
  %732 = vmatprep.subr.mxu0 0.0
  %733 = vmatpush1.xpose.msra.mxu0 0.0
  %734 = vmatprep.subr.mxu0 0.0
  %735 = vmatpush1.xpose.msra.mxu0 0.0
  %736 = vmatprep.subr.mxu0 0.0
  %737 = vmatpush1.xpose.msra.mxu0 0.0
  %738 = vmatprep.subr.mxu0 0.0
  %739 = vmatpush1.xpose.msra.mxu0 0.0
  %740 = vmatprep.subr.mxu0 0.0
  %741 = vmatpush1.xpose.msra.mxu0 %v710
  %742 = vmatprep.subr.mxu0 0.0
  %743 = vmatpush1.xpose.msra.mxu0 %v707
  %744 = vmatprep.subr.mxu0 0.0
  %745 = vmatpush2.xpose.msra.mxu0 0.0
  %746 = vmatprep.subr.mxu0 0.0
  %747 = vmatpush2.xpose.msra.mxu0 0.0
  %748 = vmatprep.subr.mxu0 0.0
  %749 = vmatpush2.xpose.msra.mxu0 0.0
  %750 = vmatprep.subr.mxu0 0.0
  %751 = vmatpush2.xpose.msra.mxu0 0.0
  %752 = vmatprep.subr.mxu0 0.0
  %753 = vmatpush2.xpose.msra.mxu0 0.0
  %754 = vmatprep.subr.mxu0 0.0
  %755 = vmatpush2.xpose.msra.mxu0 0.0
  %756 = vmatprep.subr.mxu0 0.0
  %757 = vmatpush2.xpose.msra.mxu0 0.0
  %758 = vmatprep.subr.mxu0 0.0
  %759 = vmatpush2.xpose.msra.mxu0 0.0
  %760 = vmatprep.subr.mxu0 0.0
  %761 = vmatpush2.xpose.msra.mxu0 0.0
  %762 = vmatprep.subr.mxu0 0.0
  %763 = vmatpush2.xpose.msra.mxu0 0.0
  %764 = vmatprep.subr.mxu0 0.0
  %765 = vmatpush2.xpose.msra.mxu0 0.0
  %766 = vmatprep.subr.mxu0 0.0
  %767 = vmatpush2.xpose.msra.mxu0 0.0
  %768 = vmatprep.subr.mxu0 0.0
  %769 = vmatpush2.xpose.msra.mxu0 0.0
  %770 = vmatprep.subr.mxu0 0.0
  %771 = vmatpush2.xpose.msra.mxu0 0.0
  %772 = vmatprep.subr.mxu0 0.0
  %773 = vmatpush2.xpose.msra.mxu0 0.0
  %774 = vmatprep.subr.mxu0 0.0
  %775 = vmatpush2.xpose.msra.mxu0 0.0
  %776 = vmatprep.mubr.f32.mxu0 0.0
  %777 = vmatmul.mubr.f32.gmra.mxu0 %v695
  %v778 = vpop.f32.mrf.mxu0
  %v779 = vadd.f32 0.0, %v778
  %v780 = vpop.f32.mrf.mxu0
  %781 = vmatprep.mubr.f32.mxu0 0.0
  %782 = vmatmul.mubr.f32.gmra.mxu0 %v698
  %v783 = vpop.f32.mrf.mxu0
  %v784 = vadd.f32 0.0, %v783
  %v785 = vpop.f32.mrf.mxu0
  %786 = vmatprep.mubr.f32.mxu0 0.0
  %787 = vmatmul.mubr.f32.gmra.mxu0 %v701
  %v788 = vpop.f32.mrf.mxu0
  %v789 = vadd.f32 0.0, %v788
  %v790 = vpop.f32.mrf.mxu0
  %791 = vmatprep.mubr.f32.mxu0 0.0
  %792 = vmatmul.mubr.f32.gmra.mxu0 %v704
  %v793 = vpop.f32.mrf.mxu0
  %v794 = vadd.f32 0.0, %v793
  %v795 = vpop.f32.mrf.mxu0
  %796 = vdwg.mxu0
  %v798 = vsel %vm177, %v14, 0
  %v801 = vsel %vm177, %v15, 0
  %v804 = vsel %vm177, %v16, 0
  %v807 = vsel %vm177, %v17, 0
  %809 = vmatprep.subr.mxu0 0.0
  %810 = vmatpush1.msra.mxu0 0.0
  %811 = vmatprep.subr.mxu0 0.0
  %812 = vmatpush1.msra.mxu0 0.0
  %813 = vmatprep.subr.mxu0 0.0
  %814 = vmatpush1.msra.mxu0 0.0
  %815 = vmatprep.subr.mxu0 0.0
  %816 = vmatpush1.msra.mxu0 0.0
  %817 = vmatprep.subr.mxu0 0.0
  %818 = vmatpush1.msra.mxu0 0.0
  %819 = vmatprep.subr.mxu0 0.0
  %820 = vmatpush1.msra.mxu0 0.0
  %821 = vmatprep.subr.mxu0 0.0
  %822 = vmatpush1.msra.mxu0 0.0
  %823 = vmatprep.subr.mxu0 0.0
  %824 = vmatpush1.msra.mxu0 0.0
  %825 = vmatprep.subr.mxu0 0.0
  %826 = vmatpush1.msra.mxu0 0.0
  %827 = vmatprep.subr.mxu0 0.0
  %828 = vmatpush1.msra.mxu0 0.0
  %829 = vmatprep.subr.mxu0 0.0
  %830 = vmatpush1.msra.mxu0 0.0
  %831 = vmatprep.subr.mxu0 0.0
  %832 = vmatpush1.msra.mxu0 0.0
  %833 = vmatprep.subr.mxu0 0.0
  %834 = vmatpush1.msra.mxu0 0.0
  %835 = vmatprep.subr.mxu0 0.0
  %836 = vmatpush1.msra.mxu0 0.0
  %837 = vmatprep.subr.mxu0 0.0
  %838 = vmatpush1.msra.mxu0 %v587
  %839 = vmatprep.subr.mxu0 0.0
  %840 = vmatpush1.msra.mxu0 %v586
  %841 = vmatprep.subr.mxu0 0.0
  %842 = vmatpush2.msra.mxu0 0.0
  %843 = vmatprep.subr.mxu0 0.0
  %844 = vmatpush2.msra.mxu0 0.0
  %845 = vmatprep.subr.mxu0 0.0
  %846 = vmatpush2.msra.mxu0 0.0
  %847 = vmatprep.subr.mxu0 0.0
  %848 = vmatpush2.msra.mxu0 0.0
  %849 = vmatprep.subr.mxu0 0.0
  %850 = vmatpush2.msra.mxu0 0.0
  %851 = vmatprep.subr.mxu0 0.0
  %852 = vmatpush2.msra.mxu0 0.0
  %853 = vmatprep.subr.mxu0 0.0
  %854 = vmatpush2.msra.mxu0 0.0
  %855 = vmatprep.subr.mxu0 0.0
  %856 = vmatpush2.msra.mxu0 0.0
  %857 = vmatprep.subr.mxu0 0.0
  %858 = vmatpush2.msra.mxu0 0.0
  %859 = vmatprep.subr.mxu0 0.0
  %860 = vmatpush2.msra.mxu0 0.0
  %861 = vmatprep.subr.mxu0 0.0
  %862 = vmatpush2.msra.mxu0 0.0
  %863 = vmatprep.subr.mxu0 0.0
  %864 = vmatpush2.msra.mxu0 0.0
  %865 = vmatprep.subr.mxu0 0.0
  %866 = vmatpush2.msra.mxu0 0.0
  %867 = vmatprep.subr.mxu0 0.0
  %868 = vmatpush2.msra.mxu0 0.0
  %869 = vmatprep.subr.mxu0 0.0
  %870 = vmatpush2.msra.mxu0 0.0
  %871 = vmatprep.subr.mxu0 0.0
  %872 = vmatpush2.msra.mxu0 0.0
  %873 = vmatprep.mubr.f32.mxu0 0.0
  %874 = vmatmul.mubr.f32.gmra.mxu0 %v798
  %v875 = vpop.f32.mrf.mxu0
  %v876 = vadd.f32 0.0, %v875
  %v877 = vpop.f32.mrf.mxu0
  %878 = vmatprep.mubr.f32.mxu0 0.0
  %879 = vmatmul.mubr.f32.gmra.mxu0 %v801
  %v880 = vpop.f32.mrf.mxu0
  %v881 = vadd.f32 0.0, %v880
  %v882 = vpop.f32.mrf.mxu0
  %883 = vmatprep.mubr.f32.mxu0 0.0
  %884 = vmatmul.mubr.f32.gmra.mxu0 %v804
  %v885 = vpop.f32.mrf.mxu0
  %v886 = vadd.f32 0.0, %v885
  %v887 = vpop.f32.mrf.mxu0
  %888 = vmatprep.mubr.f32.mxu0 0.0
  %889 = vmatmul.mubr.f32.gmra.mxu0 %v807
  %v890 = vpop.f32.mrf.mxu0
  %v891 = vadd.f32 0.0, %v890
  %v892 = vpop.f32.mrf.mxu0
  %893 = vdwg.mxu0
  %v895 = vsel %vm177, %v18, 0
  %v898 = vsel %vm177, %v19, 0
  %v901 = vsel %vm177, %v20, 0
  %v904 = vsel %vm177, %v21, 0
  %906 = vmatprep.subr.mxu0 0.0
  %907 = vmatpush1.msra.mxu0 0.0
  %908 = vmatprep.subr.mxu0 0.0
  %909 = vmatpush1.msra.mxu0 0.0
  %910 = vmatprep.subr.mxu0 0.0
  %911 = vmatpush1.msra.mxu0 0.0
  %912 = vmatprep.subr.mxu0 0.0
  %913 = vmatpush1.msra.mxu0 0.0
  %914 = vmatprep.subr.mxu0 0.0
  %915 = vmatpush1.msra.mxu0 0.0
  %916 = vmatprep.subr.mxu0 0.0
  %917 = vmatpush1.msra.mxu0 0.0
  %918 = vmatprep.subr.mxu0 0.0
  %919 = vmatpush1.msra.mxu0 0.0
  %920 = vmatprep.subr.mxu0 0.0
  %921 = vmatpush1.msra.mxu0 0.0
  %922 = vmatprep.subr.mxu0 0.0
  %923 = vmatpush1.msra.mxu0 0.0
  %924 = vmatprep.subr.mxu0 0.0
  %925 = vmatpush1.msra.mxu0 0.0
  %926 = vmatprep.subr.mxu0 0.0
  %927 = vmatpush1.msra.mxu0 0.0
  %928 = vmatprep.subr.mxu0 0.0
  %929 = vmatpush1.msra.mxu0 0.0
  %930 = vmatprep.subr.mxu0 0.0
  %931 = vmatpush1.msra.mxu0 0.0
  %932 = vmatprep.subr.mxu0 0.0
  %933 = vmatpush1.msra.mxu0 0.0
  %934 = vmatprep.subr.mxu0 0.0
  %935 = vmatpush1.msra.mxu0 %v590
  %936 = vmatprep.subr.mxu0 0.0
  %937 = vmatpush1.msra.mxu0 %v589
  %938 = vmatprep.subr.mxu0 0.0
  %939 = vmatpush2.msra.mxu0 0.0
  %940 = vmatprep.subr.mxu0 0.0
  %941 = vmatpush2.msra.mxu0 0.0
  %942 = vmatprep.subr.mxu0 0.0
  %943 = vmatpush2.msra.mxu0 0.0
  %944 = vmatprep.subr.mxu0 0.0
  %945 = vmatpush2.msra.mxu0 0.0
  %946 = vmatprep.subr.mxu0 0.0
  %947 = vmatpush2.msra.mxu0 0.0
  %948 = vmatprep.subr.mxu0 0.0
  %949 = vmatpush2.msra.mxu0 0.0
  %950 = vmatprep.subr.mxu0 0.0
  %951 = vmatpush2.msra.mxu0 0.0
  %952 = vmatprep.subr.mxu0 0.0
  %953 = vmatpush2.msra.mxu0 0.0
  %954 = vmatprep.subr.mxu0 0.0
  %955 = vmatpush2.msra.mxu0 0.0
  %956 = vmatprep.subr.mxu0 0.0
  %957 = vmatpush2.msra.mxu0 0.0
  %958 = vmatprep.subr.mxu0 0.0
  %959 = vmatpush2.msra.mxu0 0.0
  %960 = vmatprep.subr.mxu0 0.0
  %961 = vmatpush2.msra.mxu0 0.0
  %962 = vmatprep.subr.mxu0 0.0
  %963 = vmatpush2.msra.mxu0 0.0
  %964 = vmatprep.subr.mxu0 0.0
  %965 = vmatpush2.msra.mxu0 0.0
  %966 = vmatprep.subr.mxu0 0.0
  %967 = vmatpush2.msra.mxu0 0.0
  %968 = vmatprep.subr.mxu0 0.0
  %969 = vmatpush2.msra.mxu0 0.0
  %970 = vmatprep.mubr.f32.mxu0 0.0
  %971 = vmatmul.mubr.f32.gmra.mxu0 %v895
  %v972 = vpop.f32.mrf.mxu0
  %v973 = vadd.f32 0.0, %v972
  %v974 = vpop.f32.mrf.mxu0
  %975 = vmatprep.mubr.f32.mxu0 0.0
  %976 = vmatmul.mubr.f32.gmra.mxu0 %v898
  %v977 = vpop.f32.mrf.mxu0
  %v978 = vadd.f32 0.0, %v977
  %v979 = vpop.f32.mrf.mxu0
  %980 = vmatprep.mubr.f32.mxu0 0.0
  %981 = vmatmul.mubr.f32.gmra.mxu0 %v901
  %v982 = vpop.f32.mrf.mxu0
  %v983 = vadd.f32 0.0, %v982
  %v984 = vpop.f32.mrf.mxu0
  %985 = vmatprep.mubr.f32.mxu0 0.0
  %986 = vmatmul.mubr.f32.gmra.mxu0 %v904
  %v987 = vpop.f32.mrf.mxu0
  %v988 = vadd.f32 0.0, %v987
  %v989 = vpop.f32.mrf.mxu0
  %990 = vdwg.mxu0
  %v992 = vsel %vm102, %v876, 0
  %v995 = vsel %vm102, %v881, 0
  %v998 = vsel %vm102, %v886, 0
  %v1001 = vsel %vm102, %v891, 0
  %1003 = vmatprep.subr.mxu0 0.0
  %1004 = vmatpush1.xpose.msra.mxu0 0.0
  %1005 = vmatprep.subr.mxu0 0.0
  %1006 = vmatpush1.xpose.msra.mxu0 0.0
  %1007 = vmatprep.subr.mxu0 0.0
  %1008 = vmatpush1.xpose.msra.mxu0 0.0
  %1009 = vmatprep.subr.mxu0 0.0
  %1010 = vmatpush1.xpose.msra.mxu0 0.0
  %1011 = vmatprep.subr.mxu0 0.0
  %1012 = vmatpush1.xpose.msra.mxu0 0.0
  %1013 = vmatprep.subr.mxu0 0.0
  %1014 = vmatpush1.xpose.msra.mxu0 0.0
  %1015 = vmatprep.subr.mxu0 0.0
  %1016 = vmatpush1.xpose.msra.mxu0 0.0
  %1017 = vmatprep.subr.mxu0 0.0
  %1018 = vmatpush1.xpose.msra.mxu0 0.0
  %1019 = vmatprep.subr.mxu0 0.0
  %1020 = vmatpush1.xpose.msra.mxu0 0.0
  %1021 = vmatprep.subr.mxu0 0.0
  %1022 = vmatpush1.xpose.msra.mxu0 0.0
  %1023 = vmatprep.subr.mxu0 0.0
  %1024 = vmatpush1.xpose.msra.mxu0 0.0
  %1025 = vmatprep.subr.mxu0 0.0
  %1026 = vmatpush1.xpose.msra.mxu0 0.0
  %1027 = vmatprep.subr.mxu0 0.0
  %1028 = vmatpush1.xpose.msra.mxu0 0.0
  %1029 = vmatprep.subr.mxu0 0.0
  %1030 = vmatpush1.xpose.msra.mxu0 0.0
  %1031 = vmatprep.subr.mxu0 0.0
  %1032 = vmatpush1.xpose.msra.mxu0 %v607
  %1033 = vmatprep.subr.mxu0 0.0
  %1034 = vmatpush1.xpose.msra.mxu0 %v604
  %1035 = vmatprep.subr.mxu0 0.0
  %1036 = vmatpush2.xpose.msra.mxu0 0.0
  %1037 = vmatprep.subr.mxu0 0.0
  %1038 = vmatpush2.xpose.msra.mxu0 0.0
  %1039 = vmatprep.subr.mxu0 0.0
  %1040 = vmatpush2.xpose.msra.mxu0 0.0
  %1041 = vmatprep.subr.mxu0 0.0
  %1042 = vmatpush2.xpose.msra.mxu0 0.0
  %1043 = vmatprep.subr.mxu0 0.0
  %1044 = vmatpush2.xpose.msra.mxu0 0.0
  %1045 = vmatprep.subr.mxu0 0.0
  %1046 = vmatpush2.xpose.msra.mxu0 0.0
  %1047 = vmatprep.subr.mxu0 0.0
  %1048 = vmatpush2.xpose.msra.mxu0 0.0
  %1049 = vmatprep.subr.mxu0 0.0
  %1050 = vmatpush2.xpose.msra.mxu0 0.0
  %1051 = vmatprep.subr.mxu0 0.0
  %1052 = vmatpush2.xpose.msra.mxu0 0.0
  %1053 = vmatprep.subr.mxu0 0.0
  %1054 = vmatpush2.xpose.msra.mxu0 0.0
  %1055 = vmatprep.subr.mxu0 0.0
  %1056 = vmatpush2.xpose.msra.mxu0 0.0
  %1057 = vmatprep.subr.mxu0 0.0
  %1058 = vmatpush2.xpose.msra.mxu0 0.0
  %1059 = vmatprep.subr.mxu0 0.0
  %1060 = vmatpush2.xpose.msra.mxu0 0.0
  %1061 = vmatprep.subr.mxu0 0.0
  %1062 = vmatpush2.xpose.msra.mxu0 0.0
  %1063 = vmatprep.subr.mxu0 0.0
  %1064 = vmatpush2.xpose.msra.mxu0 0.0
  %1065 = vmatprep.subr.mxu0 0.0
  %1066 = vmatpush2.xpose.msra.mxu0 0.0
  %1067 = vmatprep.mubr.f32.mxu0 0.0
  %1068 = vmatmul.mubr.f32.gmra.mxu0 %v992
  %v1069 = vpop.f32.mrf.mxu0
  %v1070 = vadd.f32 0.0, %v1069
  %v1071 = vpop.f32.mrf.mxu0
  %1072 = vmatprep.mubr.f32.mxu0 0.0
  %1073 = vmatmul.mubr.f32.gmra.mxu0 %v995
  %v1074 = vpop.f32.mrf.mxu0
  %v1075 = vadd.f32 0.0, %v1074
  %v1076 = vpop.f32.mrf.mxu0
  %1077 = vmatprep.mubr.f32.mxu0 0.0
  %1078 = vmatmul.mubr.f32.gmra.mxu0 %v998
  %v1079 = vpop.f32.mrf.mxu0
  %v1080 = vadd.f32 0.0, %v1079
  %v1081 = vpop.f32.mrf.mxu0
  %1082 = vmatprep.mubr.f32.mxu0 0.0
  %1083 = vmatmul.mubr.f32.gmra.mxu0 %v1001
  %v1084 = vpop.f32.mrf.mxu0
  %v1085 = vadd.f32 0.0, %v1084
  %v1086 = vpop.f32.mrf.mxu0
  %1087 = vdwg.mxu0
  %v1089 = vsel %vm102, %v973, 0
  %v1092 = vsel %vm102, %v978, 0
  %v1095 = vsel %vm102, %v983, 0
  %v1098 = vsel %vm102, %v988, 0
  %1100 = vmatprep.subr.mxu0 0.0
  %1101 = vmatpush1.xpose.msra.mxu0 0.0
  %1102 = vmatprep.subr.mxu0 0.0
  %1103 = vmatpush1.xpose.msra.mxu0 0.0
  %1104 = vmatprep.subr.mxu0 0.0
  %1105 = vmatpush1.xpose.msra.mxu0 0.0
  %1106 = vmatprep.subr.mxu0 0.0
  %1107 = vmatpush1.xpose.msra.mxu0 0.0
  %1108 = vmatprep.subr.mxu0 0.0
  %1109 = vmatpush1.xpose.msra.mxu0 0.0
  %1110 = vmatprep.subr.mxu0 0.0
  %1111 = vmatpush1.xpose.msra.mxu0 0.0
  %1112 = vmatprep.subr.mxu0 0.0
  %1113 = vmatpush1.xpose.msra.mxu0 0.0
  %1114 = vmatprep.subr.mxu0 0.0
  %1115 = vmatpush1.xpose.msra.mxu0 0.0
  %1116 = vmatprep.subr.mxu0 0.0
  %1117 = vmatpush1.xpose.msra.mxu0 0.0
  %1118 = vmatprep.subr.mxu0 0.0
  %1119 = vmatpush1.xpose.msra.mxu0 0.0
  %1120 = vmatprep.subr.mxu0 0.0
  %1121 = vmatpush1.xpose.msra.mxu0 0.0
  %1122 = vmatprep.subr.mxu0 0.0
  %1123 = vmatpush1.xpose.msra.mxu0 0.0
  %1124 = vmatprep.subr.mxu0 0.0
  %1125 = vmatpush1.xpose.msra.mxu0 0.0
  %1126 = vmatprep.subr.mxu0 0.0
  %1127 = vmatpush1.xpose.msra.mxu0 0.0
  %1128 = vmatprep.subr.mxu0 0.0
  %1129 = vmatpush1.xpose.msra.mxu0 %v710
  %1130 = vmatprep.subr.mxu0 0.0
  %1131 = vmatpush1.xpose.msra.mxu0 %v707
  %1132 = vmatprep.subr.mxu0 0.0
  %1133 = vmatpush2.xpose.msra.mxu0 0.0
  %1134 = vmatprep.subr.mxu0 0.0
  %1135 = vmatpush2.xpose.msra.mxu0 0.0
  %1136 = vmatprep.subr.mxu0 0.0
  %1137 = vmatpush2.xpose.msra.mxu0 0.0
  %1138 = vmatprep.subr.mxu0 0.0
  %1139 = vmatpush2.xpose.msra.mxu0 0.0
  %1140 = vmatprep.subr.mxu0 0.0
  %1141 = vmatpush2.xpose.msra.mxu0 0.0
  %1142 = vmatprep.subr.mxu0 0.0
  %1143 = vmatpush2.xpose.msra.mxu0 0.0
  %1144 = vmatprep.subr.mxu0 0.0
  %1145 = vmatpush2.xpose.msra.mxu0 0.0
  %1146 = vmatprep.subr.mxu0 0.0
  %1147 = vmatpush2.xpose.msra.mxu0 0.0
  %1148 = vmatprep.subr.mxu0 0.0
  %1149 = vmatpush2.xpose.msra.mxu0 0.0
  %1150 = vmatprep.subr.mxu0 0.0
  %1151 = vmatpush2.xpose.msra.mxu0 0.0
  %1152 = vmatprep.subr.mxu0 0.0
  %1153 = vmatpush2.xpose.msra.mxu0 0.0
  %1154 = vmatprep.subr.mxu0 0.0
  %1155 = vmatpush2.xpose.msra.mxu0 0.0
  %1156 = vmatprep.subr.mxu0 0.0
  %1157 = vmatpush2.xpose.msra.mxu0 0.0
  %1158 = vmatprep.subr.mxu0 0.0
  %1159 = vmatpush2.xpose.msra.mxu0 0.0
  %1160 = vmatprep.subr.mxu0 0.0
  %1161 = vmatpush2.xpose.msra.mxu0 0.0
  %1162 = vmatprep.subr.mxu0 0.0
  %1163 = vmatpush2.xpose.msra.mxu0 0.0
  %1164 = vmatprep.mubr.f32.mxu0 0.0
  %1165 = vmatmul.mubr.f32.gmra.mxu0 %v1089
  %v1166 = vpop.f32.mrf.mxu0
  %v1167 = vadd.f32 0.0, %v1166
  %v1168 = vpop.f32.mrf.mxu0
  %1169 = vmatprep.mubr.f32.mxu0 0.0
  %1170 = vmatmul.mubr.f32.gmra.mxu0 %v1092
  %v1171 = vpop.f32.mrf.mxu0
  %v1172 = vadd.f32 0.0, %v1171
  %v1173 = vpop.f32.mrf.mxu0
  %1174 = vmatprep.mubr.f32.mxu0 0.0
  %1175 = vmatmul.mubr.f32.gmra.mxu0 %v1095
  %v1176 = vpop.f32.mrf.mxu0
  %v1177 = vadd.f32 0.0, %v1176
  %v1178 = vpop.f32.mrf.mxu0
  %1179 = vmatprep.mubr.f32.mxu0 0.0
  %1180 = vmatmul.mubr.f32.gmra.mxu0 %v1098
  %v1181 = vpop.f32.mrf.mxu0
  %v1182 = vadd.f32 0.0, %v1181
  %v1183 = vpop.f32.mrf.mxu0
  %1184 = vdwg.mxu0
  %v1185 = vmul.f32 %v14, %v676
  %v1186 = vmul.f32 %v15, %v681
  %v1187 = vmul.f32 %v16, %v686
  %v1188 = vmul.f32 %v17, %v691
  %v1189 = vmul.f32 %v18, %v779
  %v1190 = vmul.f32 %v19, %v784
  %v1191 = vmul.f32 %v20, %v789
  %v1192 = vmul.f32 %v21, %v794
  %v1193 = vmul.f32 %v14, %v1070
  %v1194 = vmul.f32 %v15, %v1075
  %v1195 = vmul.f32 %v16, %v1080
  %v1196 = vmul.f32 %v17, %v1085
  %v1197 = vmul.f32 %v18, %v1167
  %v1198 = vmul.f32 %v19, %v1172
  %v1199 = vmul.f32 %v20, %v1177
  %v1200 = vmul.f32 %v21, %v1182
  %1201 = vst.msk [vmem:[%s3] sm:$0xff] %vm177, %v14
  %1202 = vst.msk [vmem:[%s3 + $0x8] sm:$0xff] %vm177, %v15
  %1203 = vst.msk [vmem:[%s3 + $0x10] sm:$0xff] %vm177, %v16
  %1204 = vst.msk [vmem:[%s3 + $0x18] sm:$0xff] %vm177, %v17
  %1205 = vst.msk [vmem:[%s3 + $0x20] sm:$0xff] %vm177, %v676
  %1206 = vst.msk [vmem:[%s3 + $0x28] sm:$0xff] %vm177, %v681
  %1207 = vst.msk [vmem:[%s3 + $0x30] sm:$0xff] %vm177, %v686
  %1208 = vst.msk [vmem:[%s3 + $0x38] sm:$0xff] %vm177, %v691
  %1209 = vst.msk [vmem:[%s3 + $0x40] sm:$0xff] %vm177, %v1185
  %1210 = vst.msk [vmem:[%s3 + $0x48] sm:$0xff] %vm177, %v1186
  %1211 = vst.msk [vmem:[%s3 + $0x50] sm:$0xff] %vm177, %v1187
  %1212 = vst.msk [vmem:[%s3 + $0x58] sm:$0xff] %vm177, %v1188
  %1213 = vst.msk [vmem:[%s3 + $0x60] sm:$0xff] %vm177, %v1193
  %1214 = vst.msk [vmem:[%s3 + $0x68] sm:$0xff] %vm177, %v1194
  %1215 = vst.msk [vmem:[%s3 + $0x70] sm:$0xff] %vm177, %v1195
  %1216 = vst.msk [vmem:[%s3 + $0x78] sm:$0xff] %vm177, %v1196
  %1217 = vst.msk [vmem:[%s3 + $0x80] sm:$0xff] %vm177, %v18
  %1218 = vst.msk [vmem:[%s3 + $0x88] sm:$0xff] %vm177, %v19
  %1219 = vst.msk [vmem:[%s3 + $0x90] sm:$0xff] %vm177, %v20
  %1220 = vst.msk [vmem:[%s3 + $0x98] sm:$0xff] %vm177, %v21
  %1221 = vst.msk [vmem:[%s3 + $0xa0] sm:$0xff] %vm177, %v779
  %1222 = vst.msk [vmem:[%s3 + $0xa8] sm:$0xff] %vm177, %v784
  %1223 = vst.msk [vmem:[%s3 + $0xb0] sm:$0xff] %vm177, %v789
  %1224 = vst.msk [vmem:[%s3 + $0xb8] sm:$0xff] %vm177, %v794
  %1225 = vst.msk [vmem:[%s3 + $0xc0] sm:$0xff] %vm177, %v1189
  %1226 = vst.msk [vmem:[%s3 + $0xc8] sm:$0xff] %vm177, %v1190
  %1227 = vst.msk [vmem:[%s3 + $0xd0] sm:$0xff] %vm177, %v1191
  %1228 = vst.msk [vmem:[%s3 + $0xd8] sm:$0xff] %vm177, %v1192
  %1229 = vst.msk [vmem:[%s3 + $0xe0] sm:$0xff] %vm177, %v1197
  %1230 = vst.msk [vmem:[%s3 + $0xe8] sm:$0xff] %vm177, %v1198
  %1231 = vst.msk [vmem:[%s3 + $0xf0] sm:$0xff] %vm177, %v1199
  %1232 = vst.msk [vmem:[%s3 + $0xf8] sm:$0xff] %vm177, %v1200
  // Predicated region
  $region14: #{cq_attention.1} parent=0 // pred_check
    _
  $region15: #{cq_attention.1} parent=0 // pred_check_branch
    %1234 = sbr.rel (0) target = $region17
  $region16: #{cq_attention.1} parent=0 // pred_region
    _
  $region17: #{cq_attention.1} parent=0 // pred_fallthru
    _
  // Predicated region
  $region18: #{cq_attention.1} parent=0 // pred_check
    _
  $region19: #{cq_attention.1} parent=0 // pred_check_branch
    %1236 = sbr.rel (0) target = $region21
  $region20: #{cq_attention.1} parent=0 // pred_region
    _
  $region21: #{cq_attention.1} parent=0 // pred_fallthru
    _

</llo_original>
